<compile_context>
chip_gen: v5e
topology: v5e:2x2
jax: 0.10.0
libtpu: 0.0.40
codegen_flags: <defaults>
</compile_context>

<pallas_src>
import functools

import jax
import jax.numpy as jnp
from jax.experimental import pallas as pl
from jax.experimental.pallas import tpu as pltpu

EPS = 1e-5
LANE = 128
VPU_MAX_C = 16      # <= this many real input channels -> f32 VPU conv path


def _round_up(v, m):
    return (v + m - 1) // m * m


def _pick_row_tile(m, target=512):
    # Largest divisor of m that is a multiple of 8 and <= target; fallback: m
    # (a block equal to the full dim is always legal).
    for d in range(min(target, m), 0, -1):
        if m % d == 0 and d % 8 == 0:
            return d
    return m


@functools.lru_cache(maxsize=None)
def _vmem_limit():
    # Per-generation VMEM ceiling: ~96 MiB on v5e/v6e (128 MiB physical),
    # ~48 MiB on v7x (64 MiB physical).
    try:
        cap = int(pltpu.get_tpu_info().vmem_capacity_bytes)
    except Exception:
        cap = 64 * 1024 * 1024
    return int(min(cap * 3 // 4, 100 * 1024 * 1024))


# ------------------------------- Pallas kernels ----------------------------- #

def _bn_stats_kernel(x_ref, g_ref, b_ref, scale_ref, shift_ref, acc_ref,
                     *, m_total):
    """Per-channel batch stats -> fused affine (scale, shift).

    Grid axis 0 tiles rows of the raw (M, C) view (reduction axis,
    "arbitrary"); acc_ref holds [sum; sum_sq] per channel across the grid.
    """
    @pl.when(pl.program_id(0) == 0)
    def _init():
        acc_ref[...] = jnp.zeros_like(acc_ref)

    x = x_ref[...].astype(jnp.float32)
    # (Kept as two aligned sublane-slice updates -- proven lowering; the
    #  combined stacked write is a marginal saving.)
    acc_ref[0:1, :] += jnp.sum(x, axis=0, keepdims=True)
    acc_ref[1:2, :] += jnp.sum(x * x, axis=0, keepdims=True)

    @pl.when(pl.program_id(0) == pl.num_programs(0) - 1)
    def _finalize():
        inv_m = 1.0 / m_total
        mean = acc_ref[0:1, :] * inv_m
        var = jnp.maximum(acc_ref[1:2, :] * inv_m - mean * mean, 0.0)
        rstd = jax.lax.rsqrt(var + EPS)
        scale = g_ref[...] * rstd
        scale_ref[...] = scale
        shift_ref[...] = b_ref[...] - mean * scale


def _bn_relu_conv3x3_kernel(x_ref, scale_ref, shift_ref, w_ref, b_ref, o_ref,
                            y_ref, *, use_mxu):
    """Fused BN-apply + ReLU + 3x3 conv (pad=1, stride=1) + bias.

    x_ref: (1, H+2, W+2, C) raw-channel input, 1px spatially zero-padded.
    y_ref: VMEM scratch (1, H+2, W+2, C) holding the normalized activation,
           written once per image (j == 0) and reused for every output tile.
    """
    _, hp, wp, c = x_ref.shape
    h, w = o_ref.shape[1], o_ref.shape[2]
    tn = w_ref.shape[3]
    tn_out = o_ref.shape[3]

    @pl.when(pl.program_id(1) == 0)
    def _prologue():
        x = x_ref[...].astype(jnp.float32)
        scale = scale_ref[...].reshape(1, 1, 1, c)
        shift = shift_ref[...].reshape(1, 1, 1, c)
        y = jnp.maximum(x * scale + shift, 0.0)
        # The conv's zero padding must be zero AFTER BN+ReLU -> zero the halo.
        r = jax.lax.broadcasted_iota(jnp.int32, (1, hp, wp, c), 1)
        cc = jax.lax.broadcasted_iota(jnp.int32, (1, hp, wp, c), 2)
        interior = (r >= 1) & (r < hp - 1) & (cc >= 1) & (cc < wp - 1)
        y_ref[...] = jnp.where(interior, y, 0.0).astype(y_ref.dtype)

    y = y_ref[...]
    bias = b_ref[...]                                   # (1, tn) f32

    if use_mxu:
        # bf16 activation (cast once, in the prologue) x bf16 weights, K = C.
        acc = jnp.zeros((h * w, tn), jnp.float32)
        for kh in range(3):
            for kw in range(3):
                win = y[0, kh:kh + h, kw:kw + w, :].reshape(h * w, c)
                acc = acc + jnp.dot(win, w_ref[kh, kw, :, :],
                                    preferred_element_type=jnp.float32)
        out = (acc + bias)[:, :tn_out].reshape(1, h, w, tn_out)
    else:
        # Tiny-C VPU path: unrolled broadcast MACs over the real C channels,
        # all in f32 (no MXU, no zero-padded K work, no bf16 cast).
        wv = w_ref[...].astype(jnp.float32)             # (3, 3, C, tn), tiny
        acc = jnp.zeros((1, h, w, tn), jnp.float32)
        for kh in range(3):
            for kw in range(3):
                win = y[0:1, kh:kh + h, kw:kw + w, :].astype(jnp.float32)
                for ci in range(c):
                    acc = acc + win[:, :, :, ci:ci + 1] * \
                        wv[kh, kw, ci, :].reshape(1, 1, 1, tn)
        out = (acc + bias.reshape(1, 1, 1, tn))[..., :tn_out]

    o_ref[...] = out.astype(o_ref.dtype)


def _bn_relu_mm_kernel(x_ref, scale_ref, shift_ref, w_ref, b_ref, o_ref,
                       y_ref, *, use_mxu):
    """Fused BN-apply + ReLU + 1x1 conv (matmul) + bias on a (TM, C) tile."""
    c = x_ref.shape[1]
    tn = w_ref.shape[1]
    tn_out = o_ref.shape[1]

    @pl.when(pl.program_id(1) == 0)
    def _prologue():
        x = x_ref[...].astype(jnp.float32)
        y = jnp.maximum(x * scale_ref[...] + shift_ref[...], 0.0)
        y_ref[...] = y.astype(y_ref.dtype)              # cast once (bf16/MXU)

    if use_mxu:
        acc = jnp.dot(y_ref[...], w_ref[...],
                      preferred_element_type=jnp.float32)
    else:
        y = y_ref[...].astype(jnp.float32)
        wv = w_ref[...].astype(jnp.float32)             # (C, tn)
        acc = jnp.zeros((y.shape[0], tn), jnp.float32)
        for ci in range(c):
            acc = acc + y[:, ci:ci + 1] * wv[ci, :].reshape(1, tn)

    out = acc + b_ref[...]
    o_ref[...] = out[:, :tn_out].astype(o_ref.dtype)


# ---------------------------- pallas_call wrappers --------------------------- #

def bn_stats(x2d, gamma_2d, beta_2d, m_total):
    m, c = x2d.shape
    tm = _pick_row_tile(m)
    kern = functools.partial(_bn_stats_kernel, m_total=float(m_total))
    return pl.pallas_call(
        kern,
        out_shape=(jax.ShapeDtypeStruct((1, c), jnp.float32),
                   jax.ShapeDtypeStruct((1, c), jnp.float32)),
        grid_spec=pltpu.PrefetchScalarGridSpec(
            num_scalar_prefetch=0,
            grid=(m // tm,),
            in_specs=[
                pl.BlockSpec((tm, c), lambda i: (i, 0)),
                pl.BlockSpec((1, c), lambda i: (0, 0)),
                pl.BlockSpec((1, c), lambda i: (0, 0)),
            ],
            out_specs=(pl.BlockSpec((1, c), lambda i: (0, 0)),
                       pl.BlockSpec((1, c), lambda i: (0, 0))),
            scratch_shapes=[pltpu.VMEM((2, c), jnp.float32)]),
        compiler_params=pltpu.CompilerParams(
            dimension_semantics=("arbitrary",),
            vmem_limit_bytes=_vmem_limit()),
    )(x2d, gamma_2d, beta_2d)


def _out_width(out_ch, tn, npad):
    # Write only the real output channels when they fit in a single lane tile
    # (or tile exactly); otherwise fall back to the padded width.
    return out_ch if (out_ch < tn or out_ch % tn == 0) else npad


def conv3x3_bn_relu(xp, scale, shift, w_p, b_p, out_ch):
    n, hp, wp, c = xp.shape
    h, w = hp - 2, wp - 2
    npad = w_p.shape[3]
    tn = 256 if npad % 256 == 0 else LANE     # fill 256-wide MXU N on v6e/v7x
    n_out = _out_width(out_ch, tn, npad)
    use_mxu = c > VPU_MAX_C
    act_dtype = jnp.bfloat16 if use_mxu else jnp.float32
    kern = functools.partial(_bn_relu_conv3x3_kernel, use_mxu=use_mxu)
    return pl.pallas_call(
        kern,
        out_shape=jax.ShapeDtypeStruct((n, h, w, n_out), jnp.float32),
        grid_spec=pltpu.PrefetchScalarGridSpec(
            num_scalar_prefetch=0,
            grid=(n, npad // tn),
            in_specs=[
                pl.BlockSpec((1, hp, wp, c), lambda i, j: (i, 0, 0, 0)),
                pl.BlockSpec((1, c), lambda i, j: (0, 0)),
                pl.BlockSpec((1, c), lambda i, j: (0, 0)),
                pl.BlockSpec((3, 3, c, tn), lambda i, j: (0, 0, 0, j)),
                pl.BlockSpec((1, tn), lambda i, j: (0, j)),
            ],
            out_specs=pl.BlockSpec((1, h, w, min(tn, n_out)),
                                   lambda i, j: (i, 0, 0, j)),
            scratch_shapes=[pltpu.VMEM((1, hp, wp, c), act_dtype)]),
        compiler_params=pltpu.CompilerParams(
            # j carries the normalized-activation scratch -> "arbitrary".
            dimension_semantics=("parallel", "arbitrary"),
            vmem_limit_bytes=_vmem_limit()),
    )(xp, scale, shift, w_p, b_p)


def mm1x1_bn_relu(x2d, scale, shift, w_p, b_p, out_ch):
    m, c = x2d.shape
    npad = w_p.shape[1]
    tn = 256 if npad % 256 == 0 else LANE
    n_out = _out_width(out_ch, tn, npad)
    tm = _pick_row_tile(m)
    use_mxu = c > VPU_MAX_C
    act_dtype = jnp.bfloat16 if use_mxu else jnp.float32
    kern = functools.partial(_bn_relu_mm_kernel, use_mxu=use_mxu)
    return pl.pallas_call(
        kern,
        out_shape=jax.ShapeDtypeStruct((m, n_out), jnp.float32),
        grid_spec=pltpu.PrefetchScalarGridSpec(
            num_scalar_prefetch=0,
            grid=(m // tm, npad // tn),
            in_specs=[
                pl.BlockSpec((tm, c), lambda i, j: (i, 0)),
                pl.BlockSpec((1, c), lambda i, j: (0, 0)),
                pl.BlockSpec((1, c), lambda i, j: (0, 0)),
                pl.BlockSpec((c, tn), lambda i, j: (0, j)),
                pl.BlockSpec((1, tn), lambda i, j: (0, j)),
            ],
            out_specs=pl.BlockSpec((tm, min(tn, n_out)), lambda i, j: (i, j)),
            scratch_shapes=[pltpu.VMEM((tm, c), act_dtype)]),
        compiler_params=pltpu.CompilerParams(
            dimension_semantics=("parallel", "arbitrary"),
            vmem_limit_bytes=_vmem_limit()),
    )(x2d, scale, shift, w_p, b_p)


# --------------------------- params & forward pass --------------------------- #

def init_resblock_params(key, in_ch, out_ch, kernel_size=3, padding=1, stride=1):
    assert (kernel_size, padding) in ((3, 1), (1, 0))
    if kernel_size == 3:
        assert stride == 1   # TODO(synk): strided 3x3 not needed by the module defaults.
    kw_, kb_, kg_, kbt_ = jax.random.split(key, 4)
    fan_in = in_ch * kernel_size * kernel_size
    w = jax.random.normal(kw_, (out_ch, in_ch, kernel_size, kernel_size),
                          jnp.float32) / jnp.sqrt(float(fan_in))
    b = 0.05 * jax.random.normal(kb_, (out_ch,), jnp.float32)
    gamma = 1.0 + 0.1 * jax.random.normal(kg_, (in_ch,), jnp.float32)
    beta = 0.1 * jax.random.normal(kbt_, (in_ch,), jnp.float32)
    return dict(in_ch=in_ch, out_ch=out_ch, ksize=kernel_size, padding=padding,
                stride=stride, w=w, b=b, gamma=gamma, beta=beta)


def prepare_params(p):
    """One-time: transpose weights to (kh, kw, Cin, Cout), pad ONLY the output
    channel dim to a lane multiple, and pick bf16 (MXU path) or f32 (tiny-C
    VPU path).  No K-dim / activation padding anywhere."""
    cin, cout, k = p['in_ch'], p['out_ch'], p['ksize']
    npad = _round_up(cout, LANE)
    use_mxu = cin > VPU_MAX_C
    w_dtype = jnp.bfloat16 if use_mxu else jnp.float32
    gamma_2d = p['gamma'].reshape(1, cin).astype(jnp.float32)
    beta_2d = p['beta'].reshape(1, cin).astype(jnp.float32)
    b_p = jnp.zeros((1, npad), jnp.float32).at[0, :cout].set(p['b'])
    if k == 3:
        w = jnp.transpose(p['w'], (2, 3, 1, 0))          # (3, 3, Cin, Cout)
        w_p = jnp.zeros((3, 3, cin, npad), w_dtype)
        w_p = w_p.at[:, :, :, :cout].set(w.astype(w_dtype))
    else:
        w = jnp.transpose(p['w'][:, :, 0, 0], (1, 0))    # (Cin, Cout)
        w_p = jnp.zeros((cin, npad), w_dtype)
        w_p = w_p.at[:, :cout].set(w.astype(w_dtype))
    q = dict(p)
    q.update(npad=npad, use_mxu=use_mxu, gamma_2d=gamma_2d, beta_2d=beta_2d,
             b_p=b_p, w_p=w_p)
    return q


def resblock_forward(x_nchw, pp):
    cin, ksize, stride = pp['in_ch'], pp['ksize'], pp['stride']
    x = jnp.transpose(x_nchw, (0, 2, 3, 1)).astype(jnp.float32)   # NHWC, raw C
    n, h, w, c = x.shape
    assert c == cin
    m_total = n * h * w   # BN statistics span every real input pixel only.

    scale, shift = bn_stats(x.reshape(-1, c), pp['gamma_2d'], pp['beta_2d'],
                            m_total)

    if ksize == 3:
        # Only the 1px spatial halo is padded in XLA (raw C channels, tiny);
        # the halo is forced to exactly zero post-BN/ReLU inside the kernel.
        xp = jnp.pad(x, ((0, 0), (1, 1), (1, 1), (0, 0)))
        out = conv3x3_bn_relu(xp, scale, shift, pp['w_p'], pp['b_p'],
                              pp['out_ch'])
    else:
        # Subsample BEFORE the apply: stats cover all pixels, the affine+ReLU
        # and matmul only touch pixels the strided 1x1 conv actually consumes.
        xs = x[:, ::stride, ::stride, :] if stride > 1 else x
        ho, wo = xs.shape[1], xs.shape[2]
        out2d = mm1x1_bn_relu(xs.reshape(-1, c), scale, shift,
                              pp['w_p'], pp['b_p'], pp['out_ch'])
        out = out2d.reshape(n, ho, wo, -1)

    if out.shape[-1] != pp['out_ch']:
        out = out[..., :pp['out_ch']]
    return jnp.transpose(out, (0, 3, 1, 2))   # NHWC -> NCHW


# ------------------------------ pure-JAX reference --------------------------- #

def resblock_reference(x_nchw, p):
    x = x_nchw.astype(jnp.float32)
    mean = jnp.mean(x, axis=(0, 2, 3), keepdims=True)
    var = jnp.mean(jnp.square(x - mean), axis=(0, 2, 3), keepdims=True)
    g = p['gamma'].reshape(1, -1, 1, 1)
    b = p['beta'].reshape(1, -1, 1, 1)
    y = (x - mean) * jax.lax.rsqrt(var + EPS) * g + b
    y = jnp.maximum(y, 0.0)
    out = jax.lax.conv_general_dilated(
        y, p['w'], (p['stride'], p['stride']),
        ((p['padding'], p['padding']), (p['padding'], p['padding'])),
        dimension_numbers=('NCHW', 'OIHW', 'NCHW'),
        precision=jax.lax.Precision.HIGHEST)
    return out + p['b'].reshape(1, -1, 1, 1)


# ------------------------------------ main ----------------------------------- #

if __name__ == "__main__":
    key = jax.random.PRNGKey(0)
    kx1, kp1, kx2, kp2 = jax.random.split(key, 4)

    # Default ResBlock: in_ch=4, out_ch=8, kernel 3x3, pad 1, stride 1.
    x1 = jax.random.normal(kx1, (2, 4, 16, 16), jnp.float32)
    p1 = init_resblock_params(kp1, in_ch=4, out_ch=8,
                              kernel_size=3, padding=1, stride=1)
    pp1 = prepare_params(p1)
    out1 = jax.block_until_ready(resblock_forward(x1, pp1))
    ref1 = jax.block_until_ready(resblock_reference(x1, p1))
    assert out1.shape == ref1.shape == (2, 8, 16, 16), out1.shape
    err1 = float(jnp.max(jnp.abs(out1 - ref1)))
    assert jnp.allclose(out1, ref1, rtol=3e-2, atol=3e-2), err1

    # 1x1 projection ResBlock with stride 2 (ResNet down path style).
    x2 = jax.random.normal(kx2, (2, 8, 16, 16), jnp.float32)
    p2 = init_resblock_params(kp2, in_ch=8, out_ch=16,
                              kernel_size=1, padding=0, stride=2)
    pp2 = prepare_params(p2)
    out2 = jax.block_until_ready(resblock_forward(x2, pp2))
    ref2 = jax.block_until_ready(resblock_reference(x2, p2))
    assert out2.shape == ref2.shape == (2, 16, 8, 8), out2.shape
    err2 = float(jnp.max(jnp.abs(out2 - ref2)))
    assert jnp.allclose(out2, ref2, rtol=3e-2, atol=3e-2), err2

    print("KERNEL_OK")
</pallas_src>

<mosaic_0001>
module attributes {stable_mosaic.version = 11 : i64} {
  func.func @_bn_stats_kernel(%arg0: i32, %arg1: memref<512x4xf32, #tpu.memory_space<vmem>>, %arg2: memref<1x4xf32, #tpu.memory_space<vmem>>, %arg3: memref<1x4xf32, #tpu.memory_space<vmem>>, %arg4: memref<1x4xf32, #tpu.memory_space<vmem>>, %arg5: memref<1x4xf32, #tpu.memory_space<vmem>>, %arg6: memref<2x4xf32, #tpu.memory_space<vmem>>) attributes {dimension_semantics = [#tpu.dimension_semantics<arbitrary>], iteration_bounds = array<i64: 1>, scalar_prefetch = 0 : i64, scratch_operands = 1 : i64, tpu.core_type = #tpu.core_type<tc>, window_params = [{transform_indices = @transform_0, window_bounds = array<i64: 512, 4>}, {pipeline_mode = #tpu.pipeline_mode<synchronous>, transform_indices = @transform_1, window_bounds = array<i64: 1, 4>}, {pipeline_mode = #tpu.pipeline_mode<synchronous>, transform_indices = @transform_2, window_bounds = array<i64: 1, 4>}, {pipeline_mode = #tpu.pipeline_mode<synchronous>, transform_indices = @transform_3, window_bounds = array<i64: 1, 4>}, {pipeline_mode = #tpu.pipeline_mode<synchronous>, transform_indices = @transform_4, window_bounds = array<i64: 1, 4>}]} {
    %c0_i32 = arith.constant 0 : i32
    %0 = arith.cmpi eq, %arg0, %c0_i32 : i32
    %1 = arith.extui %0 : i1 to i32
    %c0_i32_0 = arith.constant 0 : i32
    %2 = arith.cmpi ne, %1, %c0_i32_0 : i32
    scf.if %2 {
      %cst_12 = arith.constant 0.000000e+00 : f32
      %18 = vector.broadcast %cst_12 : f32 to vector<2x4xf32>
      %c0_13 = arith.constant 0 : index
      %c0_14 = arith.constant 0 : index
      %19 = vector.load %arg6[%c0_13, %c0_14] : memref<2x4xf32, #tpu.memory_space<vmem>>, vector<2x4xf32>
      tpu.vector_store %arg6[%c0_13, %c0_14], %18 {strides = array<i32>} : memref<2x4xf32, #tpu.memory_space<vmem>>, vector<2x4xf32>,
    } else {
    }
    %c0 = arith.constant 0 : index
    %c0_1 = arith.constant 0 : index
    %3 = vector.load %arg1[%c0, %c0_1] : memref<512x4xf32, #tpu.memory_space<vmem>>, vector<512x4xf32>
    %c0_2 = arith.constant 0 : index
    %c0_3 = arith.constant 0 : index
    %4 = vector.load %arg6[%c0_2, %c0_3] : memref<2x4xf32, #tpu.memory_space<vmem>>, vector<1x4xf32>
    %cst = arith.constant dense<0.000000e+00> : vector<4xf32>
    %5 = vector.multi_reduction <add>, %3, %cst [0] : vector<512x4xf32> to vector<4xf32>
    %6 = vector.shape_cast %5 : vector<4xf32> to vector<1x4xf32>
    %7 = arith.addf %4, %6 : vector<1x4xf32>
    %c0_4 = arith.constant 0 : index
    %c0_5 = arith.constant 0 : index
    %8 = vector.load %arg6[%c0_4, %c0_5] : memref<2x4xf32, #tpu.memory_space<vmem>>, vector<1x4xf32>
    tpu.vector_store %arg6[%c0_4, %c0_5], %7 {strides = array<i32>} : memref<2x4xf32, #tpu.memory_space<vmem>>, vector<1x4xf32>,
    %c1 = arith.constant 1 : index
    %c0_6 = arith.constant 0 : index
    %9 = vector.load %arg6[%c1, %c0_6] : memref<2x4xf32, #tpu.memory_space<vmem>>, vector<1x4xf32>
    %10 = arith.mulf %3, %3 : vector<512x4xf32>
    %cst_7 = arith.constant dense<0.000000e+00> : vector<4xf32>
    %11 = vector.multi_reduction <add>, %10, %cst_7 [0] : vector<512x4xf32> to vector<4xf32>
    %12 = vector.shape_cast %11 : vector<4xf32> to vector<1x4xf32>
    %13 = arith.addf %9, %12 : vector<1x4xf32>
    %c1_8 = arith.constant 1 : index
    %c0_9 = arith.constant 0 : index
    %14 = vector.load %arg6[%c1_8, %c0_9] : memref<2x4xf32, #tpu.memory_space<vmem>>, vector<1x4xf32>
    tpu.vector_store %arg6[%c1_8, %c0_9], %13 {strides = array<i32>} : memref<2x4xf32, #tpu.memory_space<vmem>>, vector<1x4xf32>,
    %c0_i32_10 = arith.constant 0 : i32
    %15 = arith.cmpi eq, %arg0, %c0_i32_10 : i32
    %16 = arith.extui %15 : i1 to i32
    %c0_i32_11 = arith.constant 0 : i32
    %17 = arith.cmpi ne, %16, %c0_i32_11 : i32
    scf.if %17 {
      %c0_12 = arith.constant 0 : index
      %c0_13 = arith.constant 0 : index
      %18 = vector.load %arg6[%c0_12, %c0_13] : memref<2x4xf32, #tpu.memory_space<vmem>>, vector<1x4xf32>
      %cst_14 = arith.constant 0.001953125 : f32
      %19 = vector.broadcast %cst_14 : f32 to vector<1x4xf32>
      %20 = arith.mulf %18, %19 : vector<1x4xf32>
      %c1_15 = arith.constant 1 : index
      %c0_16 = arith.constant 0 : index
      %21 = vector.load %arg6[%c1_15, %c0_16] : memref<2x4xf32, #tpu.memory_space<vmem>>, vector<1x4xf32>
      %cst_17 = arith.constant 0.001953125 : f32
      %22 = vector.broadcast %cst_17 : f32 to vector<1x4xf32>
      %23 = arith.mulf %21, %22 : vector<1x4xf32>
      %24 = arith.mulf %20, %20 : vector<1x4xf32>
      %25 = arith.subf %23, %24 : vector<1x4xf32>
      %cst_18 = arith.constant 0.000000e+00 : f32
      %26 = vector.broadcast %cst_18 : f32 to vector<1x4xf32>
      %27 = arith.maximumf %25, %26 : vector<1x4xf32>
      %cst_19 = arith.constant 9.99999974E-6 : f32
      %28 = vector.broadcast %cst_19 : f32 to vector<1x4xf32>
      %29 = arith.addf %27, %28 : vector<1x4xf32>
      %30 = math.rsqrt %29 : vector<1x4xf32>
      %c0_20 = arith.constant 0 : index
      %c0_21 = arith.constant 0 : index
      %31 = vector.load %arg2[%c0_20, %c0_21] : memref<1x4xf32, #tpu.memory_space<vmem>>, vector<1x4xf32>
      %32 = arith.mulf %31, %30 : vector<1x4xf32>
      %c0_22 = arith.constant 0 : index
      %c0_23 = arith.constant 0 : index
      %33 = vector.load %arg4[%c0_22, %c0_23] : memref<1x4xf32, #tpu.memory_space<vmem>>, vector<1x4xf32>
      tpu.vector_store %arg4[%c0_22, %c0_23], %32 {strides = array<i32>} : memref<1x4xf32, #tpu.memory_space<vmem>>, vector<1x4xf32>,
      %c0_24 = arith.constant 0 : index
      %c0_25 = arith.constant 0 : index
      %34 = vector.load %arg3[%c0_24, %c0_25] : memref<1x4xf32, #tpu.memory_space<vmem>>, vector<1x4xf32>
      %35 = arith.mulf %20, %32 : vector<1x4xf32>
      %36 = arith.subf %34, %35 : vector<1x4xf32>
      %c0_26 = arith.constant 0 : index
      %c0_27 = arith.constant 0 : index
      %37 = vector.load %arg5[%c0_26, %c0_27] : memref<1x4xf32, #tpu.memory_space<vmem>>, vector<1x4xf32>
      tpu.vector_store %arg5[%c0_26, %c0_27], %36 {strides = array<i32>} : memref<1x4xf32, #tpu.memory_space<vmem>>, vector<1x4xf32>,
    } else {
    }
    return
  }
  func.func @transform_0(%arg0: i32) -> (i32, i32) {
    %c0_i32 = arith.constant 0 : i32
    %c0_i32_0 = arith.constant 0 : i32
    return %arg0, %c0_i32 : i32, i32
  }
  func.func @transform_1(%arg0: i32) -> (i32, i32) {
    %c0_i32 = arith.constant 0 : i32
    %c0_i32_0 = arith.constant 0 : i32
    %c0_i32_1 = arith.constant 0 : i32
    return %c0_i32, %c0_i32_0 : i32, i32
  }
  func.func @transform_2(%arg0: i32) -> (i32, i32) {
    %c0_i32 = arith.constant 0 : i32
    %c0_i32_0 = arith.constant 0 : i32
    %c0_i32_1 = arith.constant 0 : i32
    return %c0_i32, %c0_i32_0 : i32, i32
  }
  func.func @transform_3(%arg0: i32) -> (i32, i32) {
    %c0_i32 = arith.constant 0 : i32
    %c0_i32_0 = arith.constant 0 : i32
    %c0_i32_1 = arith.constant 0 : i32
    return %c0_i32, %c0_i32_0 : i32, i32
  }
  func.func @transform_4(%arg0: i32) -> (i32, i32) {
    %c0_i32 = arith.constant 0 : i32
    %c0_i32_0 = arith.constant 0 : i32
    %c0_i32_1 = arith.constant 0 : i32
    return %c0_i32, %c0_i32_0 : i32, i32
  }
}

</mosaic_0001>

<llo_original>
// kernel: tpu_custom_call.1
$region0: #{tpu_custom_call.1}
  #allocation0 [shape = 'u32[]', space=smem, size = 0x4, offset = 0x4, fixed_abs, tag = 'smem constant byte address 0x4 - core index']
  #allocation1 [shape = 'u32[72,128]{1,0:T(1,128)}', space=vmem, size = 0x9000, scoped, tag = 'internal scratch']
  #allocation2 [shape = 'f32[2,4]{1,0:T(2,128)}', space=vmem, size = 0x400, scoped, tag = 'scratch operand']
  %s0 = inlined_call_operand.vmem [shape: f32[512,4], index: 0, kind: input, shape index: {}]
  %s1 = inlined_call_operand.vmem [shape: f32[1,4], index: 1, kind: input, shape index: {}]
  %s2 = inlined_call_operand.vmem [shape: f32[1,4], index: 2, kind: input, shape index: {}]
  %s3 = inlined_call_operand.hbm [shape: f32[1,4], index: 3, kind: output, shape index: {0}]
  %s4 = inlined_call_operand.hbm [shape: f32[1,4], index: 4, kind: output, shape index: {1}]
  %5 = xla_tuple %s3, %s4
  %s6 = sld [smem:[#allocation0]]
  $region38: #{tpu_custom_call.1} parent=0
    _
  %s8 = ssub.s32 1, %s6
  %s9 = scalar_select 0, %s8, %s6
  $region1: #{tpu_custom_call.1} parent=0
    #allocation3 [shape = 'u8[512]{0}', space=vmem, size = 0x400, scoped, tag = 'output window, operand 0, single buffered']
    #allocation4 [shape = 's32[1]{0}', space=sflag, size = 0x4, scoped, tag = 'scoped memory for tpu_custom_call.1']
    #allocation5 [shape = 'u8[512]{0}', space=vmem, size = 0x400, scoped, tag = 'output window, operand 1, single buffered']
    #allocation6 [shape = 's32[1]{0}', space=sflag, size = 0x4, scoped, tag = 'scoped memory for tpu_custom_call.1']
    %10 = vsyncpa [#allocation4], 0
    %11 = vsyncpa [#allocation6], 0
    // Predicated region
    $region2: #{tpu_custom_call.1} parent=1 // pred_check
      _
    $region3: #{tpu_custom_call.1} parent=1 // pred_check_branch
      %13 = sbr.rel (0) target = $region5
    $region4: #{tpu_custom_call.1} parent=1 // pred_region
      _
    $region5: #{tpu_custom_call.1} parent=1 // pred_fallthru
      _
    // Predicated region
    $region6: #{tpu_custom_call.1} parent=1 // pred_check
      _
    $region7: #{tpu_custom_call.1} parent=1 // pred_check_branch
      %15 = sbr.rel (0) target = $region9
    $region8: #{tpu_custom_call.1} parent=1 // pred_region
      _
    $region9: #{tpu_custom_call.1} parent=1 // pred_fallthru
      _
    // Predicated region
    $region10: #{tpu_custom_call.1} parent=1 // pred_check
      _
    $region11: #{tpu_custom_call.1} parent=1 // pred_check_branch
      %17 = sbr.rel (0) target = $region13
    $region12: #{tpu_custom_call.1} parent=1 // pred_region
      _
    $region13: #{tpu_custom_call.1} parent=1 // pred_fallthru
      _
    %p18 = scmp.eq.s32.totalorder 0, 0
    // Predicated region
    $region14: #{tpu_custom_call.1} parent=1 // pred_check
      %p19 = pneg %p18
    $region15: #{tpu_custom_call.1} parent=1 // pred_check_branch
      %21 = sbr.rel (%p19) target = $region17
    $region16: #{tpu_custom_call.1} parent=1 // pred_region
      %vm22 = vcmask 25600
      %23 = vst.msk [vmem:[#allocation2] sm:$0x3] %vm22, 0.0
    $region17: #{tpu_custom_call.1} parent=1 // pred_fallthru
      _
    %v24 = vld [vmem:[%s0] sm:$0xff]
    %v25 = vld [vmem:[%s0 + $0x8] sm:$0xff]
    %v26 = vld [vmem:[%s0 + $0x10] sm:$0xff]
    %v27 = vld [vmem:[%s0 + $0x18] sm:$0xff]
    %v28 = vld [vmem:[%s0 + $0x20] sm:$0xff]
    %v29 = vld [vmem:[%s0 + $0x28] sm:$0xff]
    %v30 = vld [vmem:[%s0 + $0x30] sm:$0xff]
    %v31 = vld [vmem:[%s0 + $0x38] sm:$0xff]
    %v32 = vld [vmem:[%s0 + $0x40] sm:$0xff]
    %v33 = vld [vmem:[%s0 + $0x48] sm:$0xff]
    %v34 = vld [vmem:[%s0 + $0x50] sm:$0xff]
    %v35 = vld [vmem:[%s0 + $0x58] sm:$0xff]
    %v36 = vld [vmem:[%s0 + $0x60] sm:$0xff]
    %v37 = vld [vmem:[%s0 + $0x68] sm:$0xff]
    %v38 = vld [vmem:[%s0 + $0x70] sm:$0xff]
    %v39 = vld [vmem:[%s0 + $0x78] sm:$0xff]
    %v40 = vld [vmem:[%s0 + $0x80] sm:$0xff]
    %v41 = vld [vmem:[%s0 + $0x88] sm:$0xff]
    %v42 = vld [vmem:[%s0 + $0x90] sm:$0xff]
    %v43 = vld [vmem:[%s0 + $0x98] sm:$0xff]
    %v44 = vld [vmem:[%s0 + $0xa0] sm:$0xff]
    %v45 = vld [vmem:[%s0 + $0xa8] sm:$0xff]
    %v46 = vld [vmem:[%s0 + $0xb0] sm:$0xff]
    %v47 = vld [vmem:[%s0 + $0xb8] sm:$0xff]
    %v48 = vld [vmem:[%s0 + $0xc0] sm:$0xff]
    %v49 = vld [vmem:[%s0 + $0xc8] sm:$0xff]
    %v50 = vld [vmem:[%s0 + $0xd0] sm:$0xff]
    %v51 = vld [vmem:[%s0 + $0xd8] sm:$0xff]
    %v52 = vld [vmem:[%s0 + $0xe0] sm:$0xff]
    %v53 = vld [vmem:[%s0 + $0xe8] sm:$0xff]
    %v54 = vld [vmem:[%s0 + $0xf0] sm:$0xff]
    %v55 = vld [vmem:[%s0 + $0xf8] sm:$0xff]
    %v56 = vld [vmem:[%s0 + $0x100] sm:$0xff]
    %v57 = vld [vmem:[%s0 + $0x108] sm:$0xff]
    %v58 = vld [vmem:[%s0 + $0x110] sm:$0xff]
    %v59 = vld [vmem:[%s0 + $0x118] sm:$0xff]
    %v60 = vld [vmem:[%s0 + $0x120] sm:$0xff]
    %v61 = vld [vmem:[%s0 + $0x128] sm:$0xff]
    %v62 = vld [vmem:[%s0 + $0x130] sm:$0xff]
    %v63 = vld [vmem:[%s0 + $0x138] sm:$0xff]
    %v64 = vld [vmem:[%s0 + $0x140] sm:$0xff]
    %v65 = vld [vmem:[%s0 + $0x148] sm:$0xff]
    %v66 = vld [vmem:[%s0 + $0x150] sm:$0xff]
    %v67 = vld [vmem:[%s0 + $0x158] sm:$0xff]
    %v68 = vld [vmem:[%s0 + $0x160] sm:$0xff]
    %v69 = vld [vmem:[%s0 + $0x168] sm:$0xff]
    %v70 = vld [vmem:[%s0 + $0x170] sm:$0xff]
    %v71 = vld [vmem:[%s0 + $0x178] sm:$0xff]
    %v72 = vld [vmem:[%s0 + $0x180] sm:$0xff]
    %v73 = vld [vmem:[%s0 + $0x188] sm:$0xff]
    %v74 = vld [vmem:[%s0 + $0x190] sm:$0xff]
    %v75 = vld [vmem:[%s0 + $0x198] sm:$0xff]
    %v76 = vld [vmem:[%s0 + $0x1a0] sm:$0xff]
    %v77 = vld [vmem:[%s0 + $0x1a8] sm:$0xff]
    %v78 = vld [vmem:[%s0 + $0x1b0] sm:$0xff]
    %v79 = vld [vmem:[%s0 + $0x1b8] sm:$0xff]
    %v80 = vld [vmem:[%s0 + $0x1c0] sm:$0xff]
    %v81 = vld [vmem:[%s0 + $0x1c8] sm:$0xff]
    %v82 = vld [vmem:[%s0 + $0x1d0] sm:$0xff]
    %v83 = vld [vmem:[%s0 + $0x1d8] sm:$0xff]
    %v84 = vld [vmem:[%s0 + $0x1e0] sm:$0xff]
    %v85 = vld [vmem:[%s0 + $0x1e8] sm:$0xff]
    %v86 = vld [vmem:[%s0 + $0x1f0] sm:$0xff]
    %v87 = vld [vmem:[%s0 + $0x1f8] sm:$0xff]
    %v88 = vld [vmem:[#allocation2] sm:$0x1]
    %vm89 = vcmask 31744
    %v90 = vsel %vm89, %v24, 0.0
    %v91 = vsel %vm89, %v25, 0.0
    %v92 = vadd.f32 %v90, %v91
    %v93 = vsel %vm89, %v26, 0.0
    %v94 = vadd.f32 %v92, %v93
    %v95 = vsel %vm89, %v27, 0.0
    %v96 = vadd.f32 %v94, %v95
    %v97 = vsel %vm89, %v28, 0.0
    %v98 = vadd.f32 %v96, %v97
    %v99 = vsel %vm89, %v29, 0.0
    %v100 = vadd.f32 %v98, %v99
    %v101 = vsel %vm89, %v30, 0.0
    %v102 = vadd.f32 %v100, %v101
    %v103 = vsel %vm89, %v31, 0.0
    %v104 = vadd.f32 %v102, %v103
    %v105 = vsel %vm89, %v32, 0.0
    %v106 = vadd.f32 %v104, %v105
    %v107 = vsel %vm89, %v33, 0.0
    %v108 = vadd.f32 %v106, %v107
    %v109 = vsel %vm89, %v34, 0.0
    %v110 = vadd.f32 %v108, %v109
    %v111 = vsel %vm89, %v35, 0.0
    %v112 = vadd.f32 %v110, %v111
    %v113 = vsel %vm89, %v36, 0.0
    %v114 = vadd.f32 %v112, %v113
    %v115 = vsel %vm89, %v37, 0.0
    %v116 = vadd.f32 %v114, %v115
    %v117 = vsel %vm89, %v38, 0.0
    %v118 = vadd.f32 %v116, %v117
    %v119 = vsel %vm89, %v39, 0.0
    %v120 = vadd.f32 %v118, %v119
    %v121 = vsel %vm89, %v40, 0.0
    %v122 = vadd.f32 %v120, %v121
    %v123 = vsel %vm89, %v41, 0.0
    %v124 = vadd.f32 %v122, %v123
    %v125 = vsel %vm89, %v42, 0.0
    %v126 = vadd.f32 %v124, %v125
    %v127 = vsel %vm89, %v43, 0.0
    %v128 = vadd.f32 %v126, %v127
    %v129 = vsel %vm89, %v44, 0.0
    %v130 = vadd.f32 %v128, %v129
    %v131 = vsel %vm89, %v45, 0.0
    %v132 = vadd.f32 %v130, %v131
    %v133 = vsel %vm89, %v46, 0.0
    %v134 = vadd.f32 %v132, %v133
    %v135 = vsel %vm89, %v47, 0.0
    %v136 = vadd.f32 %v134, %v135
    %v137 = vsel %vm89, %v48, 0.0
    %v138 = vadd.f32 %v136, %v137
    %v139 = vsel %vm89, %v49, 0.0
    %v140 = vadd.f32 %v138, %v139
    %v141 = vsel %vm89, %v50, 0.0
    %v142 = vadd.f32 %v140, %v141
    %v143 = vsel %vm89, %v51, 0.0
    %v144 = vadd.f32 %v142, %v143
    %v145 = vsel %vm89, %v52, 0.0
    %v146 = vadd.f32 %v144, %v145
    %v147 = vsel %vm89, %v53, 0.0
    %v148 = vadd.f32 %v146, %v147
    %v149 = vsel %vm89, %v54, 0.0
    %v150 = vadd.f32 %v148, %v149
    %v151 = vsel %vm89, %v55, 0.0
    %v152 = vadd.f32 %v150, %v151
    %v153 = vsel %vm89, %v56, 0.0
    %v154 = vadd.f32 %v152, %v153
    %v155 = vsel %vm89, %v57, 0.0
    %v156 = vadd.f32 %v154, %v155
    %v157 = vsel %vm89, %v58, 0.0
    %v158 = vadd.f32 %v156, %v157
    %v159 = vsel %vm89, %v59, 0.0
    %v160 = vadd.f32 %v158, %v159
    %v161 = vsel %vm89, %v60, 0.0
    %v162 = vadd.f32 %v160, %v161
    %v163 = vsel %vm89, %v61, 0.0
    %v164 = vadd.f32 %v162, %v163
    %v165 = vsel %vm89, %v62, 0.0
    %v166 = vadd.f32 %v164, %v165
    %v167 = vsel %vm89, %v63, 0.0
    %v168 = vadd.f32 %v166, %v167
    %v169 = vsel %vm89, %v64, 0.0
    %v170 = vadd.f32 %v168, %v169
    %v171 = vsel %vm89, %v65, 0.0
    %v172 = vadd.f32 %v170, %v171
    %v173 = vsel %vm89, %v66, 0.0
    %v174 = vadd.f32 %v172, %v173
    %v175 = vsel %vm89, %v67, 0.0
    %v176 = vadd.f32 %v174, %v175
    %v177 = vsel %vm89, %v68, 0.0
    %v178 = vadd.f32 %v176, %v177
    %v179 = vsel %vm89, %v69, 0.0
    %v180 = vadd.f32 %v178, %v179
    %v181 = vsel %vm89, %v70, 0.0
    %v182 = vadd.f32 %v180, %v181
    %v183 = vsel %vm89, %v71, 0.0
    %v184 = vadd.f32 %v182, %v183
    %v185 = vsel %vm89, %v72, 0.0
    %v186 = vadd.f32 %v184, %v185
    %v187 = vsel %vm89, %v73, 0.0
    %v188 = vadd.f32 %v186, %v187
    %v189 = vsel %vm89, %v74, 0.0
    %v190 = vadd.f32 %v188, %v189
    %v191 = vsel %vm89, %v75, 0.0
    %v192 = vadd.f32 %v190, %v191
    %v193 = vsel %vm89, %v76, 0.0
    %v194 = vadd.f32 %v192, %v193
    %v195 = vsel %vm89, %v77, 0.0
    %v196 = vadd.f32 %v194, %v195
    %v197 = vsel %vm89, %v78, 0.0
    %v198 = vadd.f32 %v196, %v197
    %v199 = vsel %vm89, %v79, 0.0
    %v200 = vadd.f32 %v198, %v199
    %v201 = vsel %vm89, %v80, 0.0
    %v202 = vadd.f32 %v200, %v201
    %v203 = vsel %vm89, %v81, 0.0
    %v204 = vadd.f32 %v202, %v203
    %v205 = vsel %vm89, %v82, 0.0
    %v206 = vadd.f32 %v204, %v205
    %v207 = vsel %vm89, %v83, 0.0
    %v208 = vadd.f32 %v206, %v207
    %v209 = vsel %vm89, %v84, 0.0
    %v210 = vadd.f32 %v208, %v209
    %v211 = vsel %vm89, %v85, 0.0
    %v212 = vadd.f32 %v210, %v211
    %v213 = vsel %vm89, %v86, 0.0
    %v214 = vadd.f32 %v212, %v213
    %v215 = vsel %vm89, %v87, 0.0
    %v216 = vadd.f32 %v214, %v215
    %v217 = vrot.slane %v216, 4
    %v218 = vadd.f32 %v216, %v217
    %v219 = vrot.slane %v218, 2
    %v220 = vadd.f32 %v218, %v219
    %v221 = vrot.slane %v220, 1
    %v222 = vadd.f32 %v220, %v221
    %v223 = vadd.f32 %v88, %v222
    %vm224 = vcmask 24576
    %225 = vst.msk [vmem:[#allocation2] sm:$0x1] %vm224, %v223
    %v226 = vld [vmem:[#allocation2 + $0x1] sm:$0x1]
    %v227 = vmul.f32 %v24, %v24
    %v228 = vmul.f32 %v25, %v25
    %v229 = vmul.f32 %v26, %v26
    %v230 = vmul.f32 %v27, %v27
    %v231 = vmul.f32 %v28, %v28
    %v232 = vmul.f32 %v29, %v29
    %v233 = vmul.f32 %v30, %v30
    %v234 = vmul.f32 %v31, %v31
    %v235 = vmul.f32 %v32, %v32
    %v236 = vmul.f32 %v33, %v33
    %v237 = vmul.f32 %v34, %v34
    %v238 = vmul.f32 %v35, %v35
    %v239 = vmul.f32 %v36, %v36
    %v240 = vmul.f32 %v37, %v37
    %v241 = vmul.f32 %v38, %v38
    %v242 = vmul.f32 %v39, %v39
    %v243 = vmul.f32 %v40, %v40
    %v244 = vmul.f32 %v41, %v41
    %v245 = vmul.f32 %v42, %v42
    %v246 = vmul.f32 %v43, %v43
    %v247 = vmul.f32 %v44, %v44
    %v248 = vmul.f32 %v45, %v45
    %v249 = vmul.f32 %v46, %v46
    %v250 = vmul.f32 %v47, %v47
    %v251 = vmul.f32 %v48, %v48
    %v252 = vmul.f32 %v49, %v49
    %v253 = vmul.f32 %v50, %v50
    %v254 = vmul.f32 %v51, %v51
    %v255 = vmul.f32 %v52, %v52
    %v256 = vmul.f32 %v53, %v53
    %v257 = vmul.f32 %v54, %v54
    %v258 = vmul.f32 %v55, %v55
    %v259 = vmul.f32 %v56, %v56
    %v260 = vmul.f32 %v57, %v57
    %v261 = vmul.f32 %v58, %v58
    %v262 = vmul.f32 %v59, %v59
    %v263 = vmul.f32 %v60, %v60
    %v264 = vmul.f32 %v61, %v61
    %v265 = vmul.f32 %v62, %v62
    %v266 = vmul.f32 %v63, %v63
    %v267 = vmul.f32 %v64, %v64
    %v268 = vmul.f32 %v65, %v65
    %v269 = vmul.f32 %v66, %v66
    %v270 = vmul.f32 %v67, %v67
    %v271 = vmul.f32 %v68, %v68
    %v272 = vmul.f32 %v69, %v69
    %v273 = vmul.f32 %v70, %v70
    %v274 = vmul.f32 %v71, %v71
    %v275 = vmul.f32 %v72, %v72
    %v276 = vmul.f32 %v73, %v73
    %v277 = vmul.f32 %v74, %v74
    %v278 = vmul.f32 %v75, %v75
    %v279 = vmul.f32 %v76, %v76
    %v280 = vmul.f32 %v77, %v77
    %v281 = vmul.f32 %v78, %v78
    %v282 = vmul.f32 %v79, %v79
    %v283 = vmul.f32 %v80, %v80
    %v284 = vmul.f32 %v81, %v81
    %v285 = vmul.f32 %v82, %v82
    %v286 = vmul.f32 %v83, %v83
    %v287 = vmul.f32 %v84, %v84
    %v288 = vmul.f32 %v85, %v85
    %v289 = vmul.f32 %v86, %v86
    %v290 = vmul.f32 %v87, %v87
    %v291 = vsel %vm89, %v227, 0.0
    %v292 = vsel %vm89, %v228, 0.0
    %v293 = vadd.f32 %v291, %v292
    %v294 = vsel %vm89, %v229, 0.0
    %v295 = vadd.f32 %v293, %v294
    %v296 = vsel %vm89, %v230, 0.0
    %v297 = vadd.f32 %v295, %v296
    %v298 = vsel %vm89, %v231, 0.0
    %v299 = vadd.f32 %v297, %v298
    %v300 = vsel %vm89, %v232, 0.0
    %v301 = vadd.f32 %v299, %v300
    %v302 = vsel %vm89, %v233, 0.0
    %v303 = vadd.f32 %v301, %v302
    %v304 = vsel %vm89, %v234, 0.0
    %v305 = vadd.f32 %v303, %v304
    %v306 = vsel %vm89, %v235, 0.0
    %v307 = vadd.f32 %v305, %v306
    %v308 = vsel %vm89, %v236, 0.0
    %v309 = vadd.f32 %v307, %v308
    %v310 = vsel %vm89, %v237, 0.0
    %v311 = vadd.f32 %v309, %v310
    %v312 = vsel %vm89, %v238, 0.0
    %v313 = vadd.f32 %v311, %v312
    %v314 = vsel %vm89, %v239, 0.0
    %v315 = vadd.f32 %v313, %v314
    %v316 = vsel %vm89, %v240, 0.0
    %v317 = vadd.f32 %v315, %v316
    %v318 = vsel %vm89, %v241, 0.0
    %v319 = vadd.f32 %v317, %v318
    %v320 = vsel %vm89, %v242, 0.0
    %v321 = vadd.f32 %v319, %v320
    %v322 = vsel %vm89, %v243, 0.0
    %v323 = vadd.f32 %v321, %v322
    %v324 = vsel %vm89, %v244, 0.0
    %v325 = vadd.f32 %v323, %v324
    %v326 = vsel %vm89, %v245, 0.0
    %v327 = vadd.f32 %v325, %v326
    %v328 = vsel %vm89, %v246, 0.0
    %v329 = vadd.f32 %v327, %v328
    %v330 = vsel %vm89, %v247, 0.0
    %v331 = vadd.f32 %v329, %v330
    %v332 = vsel %vm89, %v248, 0.0
    %v333 = vadd.f32 %v331, %v332
    %v334 = vsel %vm89, %v249, 0.0
    %v335 = vadd.f32 %v333, %v334
    %v336 = vsel %vm89, %v250, 0.0
    %v337 = vadd.f32 %v335, %v336
    %v338 = vsel %vm89, %v251, 0.0
    %v339 = vadd.f32 %v337, %v338
    %v340 = vsel %vm89, %v252, 0.0
    %v341 = vadd.f32 %v339, %v340
    %v342 = vsel %vm89, %v253, 0.0
    %v343 = vadd.f32 %v341, %v342
    %v344 = vsel %vm89, %v254, 0.0
    %v345 = vadd.f32 %v343, %v344
    %v346 = vsel %vm89, %v255, 0.0
    %v347 = vadd.f32 %v345, %v346
    %v348 = vsel %vm89, %v256, 0.0
    %v349 = vadd.f32 %v347, %v348
    %v350 = vsel %vm89, %v257, 0.0
    %v351 = vadd.f32 %v349, %v350
    %v352 = vsel %vm89, %v258, 0.0
    %v353 = vadd.f32 %v351, %v352
    %v354 = vsel %vm89, %v259, 0.0
    %v355 = vadd.f32 %v353, %v354
    %v356 = vsel %vm89, %v260, 0.0
    %v357 = vadd.f32 %v355, %v356
    %v358 = vsel %vm89, %v261, 0.0
    %v359 = vadd.f32 %v357, %v358
    %v360 = vsel %vm89, %v262, 0.0
    %v361 = vadd.f32 %v359, %v360
    %v362 = vsel %vm89, %v263, 0.0
    %v363 = vadd.f32 %v361, %v362
    %v364 = vsel %vm89, %v264, 0.0
    %v365 = vadd.f32 %v363, %v364
    %v366 = vsel %vm89, %v265, 0.0
    %v367 = vadd.f32 %v365, %v366
    %v368 = vsel %vm89, %v266, 0.0
    %v369 = vadd.f32 %v367, %v368
    %v370 = vsel %vm89, %v267, 0.0
    %v371 = vadd.f32 %v369, %v370
    %v372 = vsel %vm89, %v268, 0.0
    %v373 = vadd.f32 %v371, %v372
    %v374 = vsel %vm89, %v269, 0.0
    %v375 = vadd.f32 %v373, %v374
    %v376 = vsel %vm89, %v270, 0.0
    %v377 = vadd.f32 %v375, %v376
    %v378 = vsel %vm89, %v271, 0.0
    %v379 = vadd.f32 %v377, %v378
    %v380 = vsel %vm89, %v272, 0.0
    %v381 = vadd.f32 %v379, %v380
    %v382 = vsel %vm89, %v273, 0.0
    %v383 = vadd.f32 %v381, %v382
    %v384 = vsel %vm89, %v274, 0.0
    %v385 = vadd.f32 %v383, %v384
    %v386 = vsel %vm89, %v275, 0.0
    %v387 = vadd.f32 %v385, %v386
    %v388 = vsel %vm89, %v276, 0.0
    %v389 = vadd.f32 %v387, %v388
    %v390 = vsel %vm89, %v277, 0.0
    %v391 = vadd.f32 %v389, %v390
    %v392 = vsel %vm89, %v278, 0.0
    %v393 = vadd.f32 %v391, %v392
    %v394 = vsel %vm89, %v279, 0.0
    %v395 = vadd.f32 %v393, %v394
    %v396 = vsel %vm89, %v280, 0.0
    %v397 = vadd.f32 %v395, %v396
    %v398 = vsel %vm89, %v281, 0.0
    %v399 = vadd.f32 %v397, %v398
    %v400 = vsel %vm89, %v282, 0.0
    %v401 = vadd.f32 %v399, %v400
    %v402 = vsel %vm89, %v283, 0.0
    %v403 = vadd.f32 %v401, %v402
    %v404 = vsel %vm89, %v284, 0.0
    %v405 = vadd.f32 %v403, %v404
    %v406 = vsel %vm89, %v285, 0.0
    %v407 = vadd.f32 %v405, %v406
    %v408 = vsel %vm89, %v286, 0.0
    %v409 = vadd.f32 %v407, %v408
    %v410 = vsel %vm89, %v287, 0.0
    %v411 = vadd.f32 %v409, %v410
    %v412 = vsel %vm89, %v288, 0.0
    %v413 = vadd.f32 %v411, %v412
    %v414 = vsel %vm89, %v289, 0.0
    %v415 = vadd.f32 %v413, %v414
    %v416 = vsel %vm89, %v290, 0.0
    %v417 = vadd.f32 %v415, %v416
    %v418 = vrot.slane %v417, 4
    %v419 = vadd.f32 %v417, %v418
    %v420 = vrot.slane %v419, 2
    %v421 = vadd.f32 %v419, %v420
    %v422 = vrot.slane %v421, 1
    %v423 = vadd.f32 %v421, %v422
    %v424 = vadd.f32 %v226, %v423
    %425 = vst.msk [vmem:[#allocation2 + $0x1] sm:$0x1] %vm224, %v424
    // Predicated region
    $region18: #{tpu_custom_call.1} parent=1 // pred_check
      %p426 = pneg %p18
    $region19: #{tpu_custom_call.1} parent=1 // pred_check_branch
      %428 = sbr.rel (%p426) target = $region21
    $region20: #{tpu_custom_call.1} parent=1 // pred_region
      %v429 = vld [vmem:[#allocation2] sm:$0x1]
      %v430 = vmul.f32 %v429, 0.001953125
      %v431 = vld [vmem:[#allocation2 + $0x1] sm:$0x1]
      %v432 = vmul.f32 %v431, 0.001953125
      %v433 = vmul.f32 %v430, %v430
      %v434 = vsub.f32 %v432, %v433
      %v435 = vmax.f32 %v434, 0.0
      %v436 = vadd.f32 %v435, 1e-05
      %v437 = vrsqrt.pop %v436
      %v438 = vmul.f32 %v437, %v436
      %v439 = vmul.f32 %v438, %v437
      %v440 = vmul.f32 0.5, %v439
      %v441 = vsub.f32 1.5, %v440
      %v442 = vmul.f32 %v437, %v441
      %vm443 = vweird.f32 %v436
      %vm444 = vweird.f32 %v437
      %vm445 = vmor %vm443, %vm444
      %v446 = vsel %vm445, %v437, %v442
      %v447 = vld [vmem:[%s1] sm:$0x1]
      %v448 = vmul.f32 %v447, %v446
      %449 = vst.msk [vmem:[#allocation3] sm:$0x1] %vm224, %v448
      %v450 = vld [vmem:[%s2] sm:$0x1]
      %v451 = vmul.f32 %v430, %v448
      %v452 = vsub.f32 %v450, %v451
      %453 = vst.msk [vmem:[#allocation5] sm:$0x1] %vm224, %v452
    $region21: #{tpu_custom_call.1} parent=1 // pred_fallthru
      _
    // Predicated region
    $region22: #{tpu_custom_call.1} parent=1 // pred_check
      _
    $region23: #{tpu_custom_call.1} parent=1 // pred_check_branch
      %455 = sbr.rel (0) target = $region25
    $region24: #{tpu_custom_call.1} parent=1 // pred_region
      %457 = vsyncadd [#allocation4], 0
      %s459 = sshll.u32 [#allocation3], 4
      %s460 = int_to_ptr.vmem [resolvable:$true] %s459
      %s461 = sshll.u32 %s3, 4
      %s462 = int_to_ptr.hbm [resolvable:$true] %s461
      %464 = dma.vmem_to_hbm [thread:$0]  %s460, 16, %s462, [#allocation4]
    $region25: #{tpu_custom_call.1} parent=1 // pred_fallthru
      _
    // Predicated region
    $region26: #{tpu_custom_call.1} parent=1 // pred_check
      _
    $region27: #{tpu_custom_call.1} parent=1 // pred_check_branch
      %466 = sbr.rel (0) target = $region29
    $region28: #{tpu_custom_call.1} parent=1 // pred_region
      %468 = vsyncadd [#allocation6], 0
      %s470 = sshll.u32 [#allocation5], 4
      %s471 = int_to_ptr.vmem [resolvable:$true] %s470
      %s472 = sshll.u32 %s4, 4
      %s473 = int_to_ptr.hbm [resolvable:$true] %s472
      %475 = dma.vmem_to_hbm [thread:$0]  %s471, 16, %s473, [#allocation6]
    $region29: #{tpu_custom_call.1} parent=1 // pred_fallthru
      _
    // Predicated region
    $region30: #{tpu_custom_call.1} parent=1 // pred_check
      _
    $region31: #{tpu_custom_call.1} parent=1 // pred_check_branch
      %477 = sbr.rel (0) target = $region33
    $region32: #{tpu_custom_call.1} parent=1 // pred_region
      %479 = dma.done [#allocation4], 16
    $region33: #{tpu_custom_call.1} parent=1 // pred_fallthru
      _
    // Predicated region
    $region34: #{tpu_custom_call.1} parent=1 // pred_check
      _
    $region35: #{tpu_custom_call.1} parent=1 // pred_check_branch
      %481 = sbr.rel (0) target = $region37
    $region36: #{tpu_custom_call.1} parent=1 // pred_region
      %483 = dma.done [#allocation6], 16
    $region37: #{tpu_custom_call.1} parent=1 // pred_fallthru
      _
    %484 = vsyncpa [#allocation4], 1
    %485 = vsyncpa [#allocation6], 1

</llo_original>
